<compile_context>
chip_gen: v6e
topology: v6e:2x2x1
jax: 0.10.0
libtpu: 0.0.40
codegen_flags: <defaults>
</compile_context>

<pallas_src>
import functools
import math

import jax
import jax.numpy as jnp
from jax.experimental import pallas as pl
from jax.experimental.pallas import tpu as pltpu

_VMEM = pl.BlockSpec(memory_space=pltpu.MemorySpace.VMEM)
_COMPUTE_DTYPE = jnp.bfloat16
_VMEM_LIMIT = 32 * 1024 * 1024   # fits v7x's 64 MiB/TC with headroom


# ---------------------------------------------------------------------------
# Pallas kernels
# ---------------------------------------------------------------------------
def conv_bn_kernel(p_ref, w_ref, shift_ref, o_ref, acc_ref, *, apply_relu):
    """Tiled matmul: acc(init=bn_shift) += patches @ (weight*bn_scale); epilogue [relu]."""
    @pl.when(pl.program_id(2) == 0)
    def _():
        # BN shift folded into the accumulator init (saves an epilogue VPU add).
        acc_ref[...] = jnp.broadcast_to(shift_ref[...], acc_ref.shape)

    acc_ref[...] += jnp.dot(p_ref[...], w_ref[...],
                            preferred_element_type=jnp.float32)

    @pl.when(pl.program_id(2) == pl.num_programs(2) - 1)
    def _():
        y = acc_ref[...]
        if apply_relu:
            y = jnp.maximum(y, 0.0)
        o_ref[...] = y.astype(o_ref.dtype)


def conv_bn_res_kernel(p_ref, w_ref, shift_ref, res_ref, o_ref, acc_ref, *, apply_relu):
    """Same as conv_bn_kernel but fuses the (bf16) residual add into the epilogue."""
    @pl.when(pl.program_id(2) == 0)
    def _():
        acc_ref[...] = jnp.broadcast_to(shift_ref[...], acc_ref.shape)

    acc_ref[...] += jnp.dot(p_ref[...], w_ref[...],
                            preferred_element_type=jnp.float32)

    @pl.when(pl.program_id(2) == pl.num_programs(2) - 1)
    def _():
        y = acc_ref[...] + res_ref[...].astype(jnp.float32)
        if apply_relu:
            y = jnp.maximum(y, 0.0)
        o_ref[...] = y.astype(o_ref.dtype)


def avgpool_kernel(x_ref, o_ref):
    """Global average pool: fp32 mean over the flattened spatial axis (axis 1)."""
    o_ref[...] = jnp.mean(x_ref[...].astype(jnp.float32), axis=1)


# ---------------------------------------------------------------------------
# Tiling helpers
# ---------------------------------------------------------------------------
def _round_up(x, m):
    return ((x + m - 1) // m) * m


def _pick_tile(dim, cap, align, slack=1.05):
    """Pick (tile, padded_dim): tile is a multiple of `align`, <= cap, divides
    padded_dim.  Prefer the largest tile whose zero-padding overhead stays
    within `slack` of the minimally aligned size, i.e. fewer grid steps /
    accumulator revisits without blowing up DMA+FLOP waste."""
    dim_al = _round_up(dim, align)
    if dim_al <= cap:                    # single block covers the whole dim
        return dim_al, dim_al
    limit = int(dim_al * slack)
    best_t, best_pad = align, dim_al
    for t in range(align, cap + 1, align):
        padded = _round_up(dim, t)
        if padded <= limit and t > best_t:
            best_t, best_pad = t, padded
    return best_t, best_pad


# ---------------------------------------------------------------------------
# Wrappers (glue: padding / im2col / reshapes in plain JAX)
# ---------------------------------------------------------------------------
def conv_bn_act(x, w, scale, shift, stride, pad, residual=None, relu=True):
    """x: (N,H,W,Cin) NHWC bf16, w: (Cout,Cin,kh,kw) PyTorch OIHW fp32.

    Computes relu( bn(conv(x, w)) [+ residual] ) with bn folded into
    weight-scale + shift.  MXU inputs bf16, accumulation/epilogue fp32,
    result stored bf16.
    """
    N, H, W, Cin = x.shape
    Cout, Cin_w, kh, kw = w.shape
    assert Cin == Cin_w
    OH = (H + 2 * pad - kh) // stride + 1
    OW = (W + 2 * pad - kw) // stride + 1
    M = N * OH * OW
    K = Cin * kh * kw

    # --- lane-dense channel-concat im2col (bf16). K order = (kh, kw, cin):
    #     each shifted view keeps channels on the lane axis, so the build is a
    #     cheap copy/fusion rather than a lane-interleaving shuffle.
    xp = jnp.pad(x.astype(_COMPUTE_DTYPE),
                 ((0, 0), (pad, pad), (pad, pad), (0, 0)))
    cols = [
        xp[:, i:i + stride * (OH - 1) + 1:stride,
              j:j + stride * (OW - 1) + 1:stride, :]
        for i in range(kh) for j in range(kw)
    ]
    patches = jnp.concatenate(cols, axis=-1).reshape(M, K)     # (M, kh*kw*Cin)

    # --- fold BN scale into the weight matrix; OIHW -> (kh,kw,cin,cout) to
    #     match the patches' column order.
    wm = (jnp.transpose(w, (2, 3, 1, 0)).reshape(K, Cout)
          * scale[None, :]).astype(_COMPUTE_DTYPE)              # (K, Cout)

    # --- MXU / lane-aligned tile plan.
    tm, Mp = _pick_tile(M, 512, 16)       # 16-row align for bf16 sublane packing
    tk, Kp = _pick_tile(K, 1536, 128)     # deep K tiles -> few accumulator revisits
    tn, Cp = _pick_tile(Cout, 512, 128)   # full Cout for layer3/4, lane-dense stores
    # Keep >=2 parallel (M,N) blocks where possible so v7x's two TensorCores
    # both get work on the late, compute-heavy layers.
    if (Mp // tm) * (Cp // tn) < 2:
        if tn >= 256:
            tn //= 2
        elif tm >= 32 and tm % 32 == 0:
            tm //= 2

    patches = jnp.pad(patches, ((0, Mp - M), (0, Kp - K)))
    wm = jnp.pad(wm, ((0, Kp - K), (0, Cp - Cout)))
    shift_p = jnp.pad(shift, (0, Cp - Cout)).reshape(1, Cp).astype(jnp.float32)

    grid = (Mp // tm, Cp // tn, Kp // tk)

    in_specs = [
        pl.BlockSpec((tm, tk), lambda i, j, k: (i, k)),        # patches
        pl.BlockSpec((tk, tn), lambda i, j, k: (k, j)),        # weight
        pl.BlockSpec((1, tn), lambda i, j, k: (0, j)),         # bn shift
    ]
    operands = [patches, wm, shift_p]

    if residual is not None:
        res = jnp.pad(residual.reshape(M, Cout).astype(_COMPUTE_DTYPE),
                      ((0, Mp - M), (0, Cp - Cout)))
        in_specs.append(pl.BlockSpec((tm, tn), lambda i, j, k: (i, j)))
        operands.append(res)
        kernel = functools.partial(conv_bn_res_kernel, apply_relu=relu)
        res_bytes = Mp * Cp * 2
    else:
        kernel = functools.partial(conv_bn_kernel, apply_relu=relu)
        res_bytes = 0

    cost = pl.CostEstimate(
        flops=2 * Mp * Kp * Cp,
        transcendentals=0,
        bytes_accessed=(Mp * Kp + Kp * Cp + Mp * Cp) * 2 + res_bytes,
    )

    out = pl.pallas_call(
        kernel,
        out_shape=jax.ShapeDtypeStruct((Mp, Cp), _COMPUTE_DTYPE),
        grid_spec=pltpu.PrefetchScalarGridSpec(
            num_scalar_prefetch=0,
            grid=grid,
            in_specs=in_specs,
            out_specs=pl.BlockSpec((tm, tn), lambda i, j, k: (i, j)),
            scratch_shapes=[pltpu.VMEM((tm, tn), jnp.float32)],
        ),
        compiler_params=pltpu.CompilerParams(
            dimension_semantics=("parallel", "parallel", "arbitrary"),
            vmem_limit_bytes=_VMEM_LIMIT,
        ),
        cost_estimate=cost,
    )(*operands)

    # Padded rows/cols are dead; this slice is consumed by the next layer's
    # pad/concat (im2col), so XLA fuses it rather than round-tripping HBM.
    return out[:M, :Cout].reshape(N, OH, OW, Cout)


def maxpool_3x3_s2_p1(x):
    """3x3 / stride-2 / pad-1 max pool (bf16).

    Memory-bound; done as a fused plain-JAX max tree over 9 shifted strided
    views (XLA fuses it) instead of materializing a 9x copy in HBM.
    """
    N, H, W, C = x.shape
    k, s, p = 3, 2, 1
    OH = (H + 2 * p - k) // s + 1
    OW = (W + 2 * p - k) // s + 1
    xp = jnp.pad(x, ((0, 0), (p, p), (p, p), (0, 0)), constant_values=-jnp.inf)
    out = None
    for i in range(k):
        for j in range(k):
            win = xp[:, i:i + s * (OH - 1) + 1:s, j:j + s * (OW - 1) + 1:s, :]
            out = win if out is None else jnp.maximum(out, win)
    return out


def global_avgpool(x):
    # TODO(synk): could be fused into the last conv's epilogue; the final map is
    # only (N, 7, 7, 512) bf16 so the standalone kernel is already cheap.
    N, H, W, C = x.shape
    xr = x.reshape(N, H * W, C)
    return pl.pallas_call(
        avgpool_kernel,
        out_shape=jax.ShapeDtypeStruct((N, C), jnp.float32),
        in_specs=[_VMEM],
        out_specs=_VMEM,
        compiler_params=pltpu.CompilerParams(vmem_limit_bytes=_VMEM_LIMIT),
    )(xr)


# ---------------------------------------------------------------------------
# ResNet-34 backbone (eval mode), deterministic parameters
# ---------------------------------------------------------------------------
def _bn_scale_shift(bn, eps=1e-5):
    scale = bn["gamma"] / jnp.sqrt(bn["var"] + eps)
    shift = bn["beta"] - bn["mean"] * scale
    return scale, shift


def init_params(key):
    keys = iter(jax.random.split(key, 64))

    def conv_w(cout, cin, k):
        fan_in = cin * k * k
        return jax.random.normal(next(keys), (cout, cin, k, k), jnp.float32) * math.sqrt(2.0 / fan_in)

    def bn(c):
        return dict(
            gamma=jnp.ones((c,), jnp.float32),
            beta=jnp.zeros((c,), jnp.float32),
            mean=jnp.zeros((c,), jnp.float32),
            var=jnp.ones((c,), jnp.float32),
        )

    params = dict(conv1=conv_w(64, 7, 7), bn1=bn(64), layers=[])
    in_c = 64
    # resnet34: [(channels, num_blocks, first_stride)]
    for out_c, nblocks, stride in [(64, 3, 1), (128, 4, 2), (256, 6, 2), (512, 3, 2)]:
        blocks = []
        for b in range(nblocks):
            s = stride if b == 0 else 1
            blk = dict(
                conv1=conv_w(out_c, in_c, 3), bn1=bn(out_c),
                conv2=conv_w(out_c, out_c, 3), bn2=bn(out_c),
            )
            if s != 1 or in_c != out_c:
                blk["downsample_conv"] = conv_w(out_c, in_c, 1)
                blk["downsample_bn"] = bn(out_c)
            blocks.append(blk)
            in_c = out_c
        params["layers"].append(dict(stride=stride, blocks=blocks))
    return params


def basic_block(x, p, stride):
    identity = x
    s1, sh1 = _bn_scale_shift(p["bn1"])
    h = conv_bn_act(x, p["conv1"], s1, sh1, stride=stride, pad=1, relu=True)
    if "downsample_conv" in p:
        sd, shd = _bn_scale_shift(p["downsample_bn"])
        identity = conv_bn_act(x, p["downsample_conv"], sd, shd,
                               stride=stride, pad=0, relu=False)
    s2, sh2 = _bn_scale_shift(p["bn2"])
    # conv2 + bn2 + residual add + relu fused in one tiled Pallas kernel call
    return conv_bn_act(h, p["conv2"], s2, sh2, stride=1, pad=1,
                       residual=identity, relu=True)


def cnn_dce_forward(params, x_nchw):
    """Equivalent of CNN_DCE.forward: returns the (N, 512) embedding."""
    x = jnp.transpose(x_nchw, (0, 2, 3, 1)).astype(_COMPUTE_DTYPE)  # NCHW -> NHWC bf16
    s, sh = _bn_scale_shift(params["bn1"])
    x = conv_bn_act(x, params["conv1"], s, sh, stride=2, pad=3, relu=True)
    x = maxpool_3x3_s2_p1(x)
    for layer in params["layers"]:
        for b, blk in enumerate(layer["blocks"]):
            x = basic_block(x, blk, layer["stride"] if b == 0 else 1)
    emb = global_avgpool(x)                                         # (N, 512) f32
    return emb


if __name__ == "__main__":
    key = jax.random.PRNGKey(0)
    pkey, xkey = jax.random.split(key)
    params = init_params(pkey)
    # Input matches the modified conv1: 7 input channels, NCHW like PyTorch.
    x = jax.random.normal(xkey, (2, 7, 16, 16), jnp.float32)
    emb = cnn_dce_forward(params, x)
    emb = jax.block_until_ready(emb)
    assert emb.shape == (2, 512), emb.shape
    assert bool(jnp.all(jnp.isfinite(emb)))
    print("KERNEL_OK")
</pallas_src>

<mosaic_0001>
module attributes {stable_mosaic.version = 11 : i64} {
  func.func @conv_bn_kernel(%arg0: i32, %arg1: i32, %arg2: i32, %arg3: memref<64x384xbf16, #tpu.memory_space<vmem>>, %arg4: memref<384x128xbf16, #tpu.memory_space<vmem>>, %arg5: memref<1x128xf32, #tpu.memory_space<vmem>>, %arg6: memref<64x128xbf16, #tpu.memory_space<vmem>>, %arg7: memref<64x128xf32, #tpu.memory_space<vmem>>) attributes {dimension_semantics = [#tpu.dimension_semantics<parallel>, #tpu.dimension_semantics<parallel>, #tpu.dimension_semantics<arbitrary>], iteration_bounds = array<i64: 2, 1, 1>, scalar_prefetch = 0 : i64, scratch_operands = 1 : i64, tpu.core_type = #tpu.core_type<tc>, window_params = [{transform_indices = @transform_0, window_bounds = array<i64: 64, 384>}, {transform_indices = @transform_1, window_bounds = array<i64: 384, 128>}, {transform_indices = @transform_2, window_bounds = array<i64: 1, 128>}, {transform_indices = @transform_3, window_bounds = array<i64: 64, 128>}]} {
    %c0_i32 = arith.constant 0 : i32
    %0 = arith.cmpi eq, %arg2, %c0_i32 : i32
    %1 = arith.extui %0 : i1 to i32
    %c0_i32_0 = arith.constant 0 : i32
    %2 = arith.cmpi ne, %1, %c0_i32_0 : i32
    scf.if %2 {
      %c0_10 = arith.constant 0 : index
      %c0_11 = arith.constant 0 : index
      %12 = vector.load %arg5[%c0_10, %c0_11] : memref<1x128xf32, #tpu.memory_space<vmem>>, vector<1x128xf32>
      %13 = vector.shape_cast %12 : vector<1x128xf32> to vector<1x128xf32>
      %14 = vector.broadcast %13 : vector<1x128xf32> to vector<64x128xf32>
      %c0_12 = arith.constant 0 : index
      %c0_13 = arith.constant 0 : index
      %15 = vector.load %arg7[%c0_12, %c0_13] : memref<64x128xf32, #tpu.memory_space<vmem>>, vector<64x128xf32>
      tpu.vector_store %arg7[%c0_12, %c0_13], %14 {strides = array<i32>} : memref<64x128xf32, #tpu.memory_space<vmem>>, vector<64x128xf32>,
    } else {
    }
    %c0 = arith.constant 0 : index
    %c0_1 = arith.constant 0 : index
    %3 = vector.load %arg7[%c0, %c0_1] : memref<64x128xf32, #tpu.memory_space<vmem>>, vector<64x128xf32>
    %c0_2 = arith.constant 0 : index
    %c0_3 = arith.constant 0 : index
    %4 = vector.load %arg3[%c0_2, %c0_3] : memref<64x384xbf16, #tpu.memory_space<vmem>>, vector<64x384xbf16>
    %c0_4 = arith.constant 0 : index
    %c0_5 = arith.constant 0 : index
    %5 = vector.load %arg4[%c0_4, %c0_5] : memref<384x128xbf16, #tpu.memory_space<vmem>>, vector<384x128xbf16>
    %cst = arith.constant dense<0.000000e+00> : vector<64x128xf32>
    %6 = tpu.matmul %4, %5, %cst {dimension_numbers = #tpu.dot_dimension_numbers<[1], [0], [0], [1], [0, 0, 1, 1], [], []>} : vector<64x384xbf16>, vector<384x128xbf16>, vector<64x128xf32> -> vector<64x128xf32>
    %7 = arith.addf %3, %6 : vector<64x128xf32>
    %c0_6 = arith.constant 0 : index
    %c0_7 = arith.constant 0 : index
    %8 = vector.load %arg7[%c0_6, %c0_7] : memref<64x128xf32, #tpu.memory_space<vmem>>, vector<64x128xf32>
    tpu.vector_store %arg7[%c0_6, %c0_7], %7 {strides = array<i32>} : memref<64x128xf32, #tpu.memory_space<vmem>>, vector<64x128xf32>,
    %c0_i32_8 = arith.constant 0 : i32
    %9 = arith.cmpi eq, %arg2, %c0_i32_8 : i32
    %10 = arith.extui %9 : i1 to i32
    %c0_i32_9 = arith.constant 0 : i32
    %11 = arith.cmpi ne, %10, %c0_i32_9 : i32
    scf.if %11 {
      %c0_10 = arith.constant 0 : index
      %c0_11 = arith.constant 0 : index
      %12 = vector.load %arg7[%c0_10, %c0_11] : memref<64x128xf32, #tpu.memory_space<vmem>>, vector<64x128xf32>
      %cst_12 = arith.constant 0.000000e+00 : f32
      %13 = vector.broadcast %cst_12 : f32 to vector<64x128xf32>
      %14 = arith.maximumf %12, %13 : vector<64x128xf32>
      %15 = arith.truncf %14 : vector<64x128xf32> to vector<64x128xbf16>
      %c0_13 = arith.constant 0 : index
      %c0_14 = arith.constant 0 : index
      %16 = vector.load %arg6[%c0_13, %c0_14] : memref<64x128xbf16, #tpu.memory_space<vmem>>, vector<64x128xbf16>
      tpu.vector_store %arg6[%c0_13, %c0_14], %15 {strides = array<i32>} : memref<64x128xbf16, #tpu.memory_space<vmem>>, vector<64x128xbf16>,
    } else {
    }
    return
  }
  func.func @transform_0(%arg0: i32, %arg1: i32, %arg2: i32) -> (i32, i32) {
    %c0_i32 = arith.constant 0 : i32
    return %arg0, %arg2 : i32, i32
  }
  func.func @transform_1(%arg0: i32, %arg1: i32, %arg2: i32) -> (i32, i32) {
    %c0_i32 = arith.constant 0 : i32
    return %arg2, %arg1 : i32, i32
  }
  func.func @transform_2(%arg0: i32, %arg1: i32, %arg2: i32) -> (i32, i32) {
    %c0_i32 = arith.constant 0 : i32
    %c0_i32_0 = arith.constant 0 : i32
    return %c0_i32, %arg1 : i32, i32
  }
  func.func @transform_3(%arg0: i32, %arg1: i32, %arg2: i32) -> (i32, i32) {
    %c0_i32 = arith.constant 0 : i32
    return %arg0, %arg1 : i32, i32
  }
}

</mosaic_0001>

<llo_original>
// kernel: tpu_custom_call.1
$region0: #{tpu_custom_call.1}
  #allocation0 [shape = 'u32[]', space=smem, size = 0x4, offset = 0x4, fixed_abs, tag = 'smem constant byte address 0x4 - core index']
  #allocation1 [shape = 'u32[144,128]{1,0:T(1,128)}', space=vmem, size = 0x12000, scoped, tag = 'internal scratch']
  #allocation2 [shape = 'f32[64,128]{1,0:T(8,128)}', space=vmem, size = 0x8000, scoped, tag = 'scratch operand']
  %s0 = inlined_call_operand.hbm [shape: bf16[128,384], index: 0, kind: input, shape index: {}]
  %s1 = inlined_call_operand.hbm [shape: bf16[384,128], index: 1, kind: input, shape index: {}]
  %s2 = inlined_call_operand.vmem [shape: f32[1,128], index: 2, kind: input, shape index: {}]
  %s3 = inlined_call_operand.hbm [shape: bf16[128,128], index: 3, kind: output, shape index: {}]
  %s4 = sld [smem:[#allocation0]]
  $region61: #{tpu_custom_call.1} parent=0
    _
  %s6 = ssub.s32 1, %s4
  %s7 = scalar_select 0, %s6, %s4
  $region1: #{tpu_custom_call.1} parent=0
    #allocation3 [shape = 'u8[98304]{0}', space=vmem, size = 0x18000, scoped, tag = 'input window, operand 0']
    #allocation4 [shape = 's32[2]{0}', space=sflag, size = 0x8, scoped, tag = 'scoped memory for tpu_custom_call.1']
    #allocation5 [shape = 's32[2]{0}', space=sflag, size = 0x8, scoped, tag = 'scoped memory for tpu_custom_call.1']
    #allocation6 [shape = 'u8[98304]{0}', space=vmem, size = 0x18000, scoped, tag = 'input window, operand 1, single buffered']
    #allocation7 [shape = 's32[1]{0}', space=sflag, size = 0x4, scoped, tag = 'scoped memory for tpu_custom_call.1']
    #allocation8 [shape = 'u8[32768]{0}', space=vmem, size = 0x8000, scoped, tag = 'output window, operand 0']
    %8 = vsyncpa [#allocation4], 0
    %s9 = scalar_lea.sflag [#allocation4], 1
    %10 = vsyncpa %s9, 0
    %11 = vsyncpa [#allocation7], 0
    %12 = vsyncpa [#allocation5], 0
    %s13 = scalar_lea.sflag [#allocation5], 1
    %14 = vsyncpa %s13, 0
    loop: start=0, step=1, limit=4
    $region2: #{tpu_custom_call.1} parent=1 // loop_pre_header
      _
    $region3: #{tpu_custom_call.1} parent=1 // loop_header
      %s16 = sphi 0, %s20
      %p17 = scmp.ge.s32.totalorder %s16, 4
      %s23 = sphi 0, %s42
      %s24 = sphi 0, %s38
      %s25 = sphi 0, %s34
      %s26 = sphi 0, %s23
      %s27 = sphi 0, %s24
      %s28 = sphi 0, %s25
      %s29 = sphi 0, %s26
      %s30 = sphi 0, %s27
      %s31 = sphi 0, %s28
      %s47 = sphi 0, %s49
      %s50 = sphi 0, %s47
      %s51 = sphi 0, %s50
      %s67 = sphi 0, %s51
      %s75 = sphi 0, %s77
      %s78 = sphi 0, %s75
      %s79 = sphi 0, %s78
      %s95 = sphi 0, %s79
      %s101 = sphi 0, %s103
      %s104 = sphi 0, %s101
      %s105 = sphi 0, %s104
      %s121 = sphi 0, %s105
      %s129 = sphi 0, %s131
      %s132 = sphi 0, %s129
      %s133 = sphi 0, %s132
      %s149 = sphi 0, %s133
    $region4: #{tpu_custom_call.1} parent=1 // loop_header_branch
      %19 = sbr.rel (%p17) target = $region8
    $region5: #{tpu_custom_call.1} parent=1 // loop_body
      %s21 = ssub.s32 %s16, 1
      %s22 = ssub.s32 %s16, 2
      %s32 = sadd.s32 1, %s25
      %p33 = scmp.ge.s32.totalorder %s32, 1
      %s34 = scalar_select %p33, 0, %s32
      %s35 = sadd.s32 1, %s24
      %s36 = scalar_select %p33, %s35, %s24
      %p37 = scmp.ge.s32.totalorder %s36, 1
      %s38 = scalar_select %p37, 0, %s36
      %s39 = sadd.s32 1, %s23
      %s40 = scalar_select %p37, %s39, %s23
      %p41 = scmp.ge.s32.totalorder %s40, 2
      %s42 = scalar_select %p41, 0, %s40
      %s43 = ssub.s32 %s23, %s42
      %s44 = ssub.s32 %s25, %s34
      %s45 = sor.u32 %s43, %s44
      %p46 = scmp.eq.s32.totalorder %s45, 0
      %s48 = sadd.s32 %s47, 1
      %s49 = scalar_select %p46, %s47, %s48
      %p52 = pneg %p46
      %p53 = scmp.eq.s32.totalorder %s16, 1
      %p54 = por %p52, %p53
      %p55 = scmp.ne.s32.totalorder %s47, %s50
      %p56 = scmp.eq.s32.totalorder %s16, 0
      %p57 = por %p55, %p56
      %p58 = scmp.ne.s32.totalorder %s47, %s50
      %p59 = scmp.eq.s32.totalorder %s21, 1
      %p60 = por %p58, %p59
      %p61 = scmp.ne.s32.totalorder %s50, %s51
      %p62 = scmp.eq.s32.totalorder %s21, 0
      %p63 = por %p61, %p62
      %p64 = scmp.ne.s32.totalorder %s50, %s51
      %p65 = scmp.eq.s32.totalorder %s22, 1
      %p66 = por %p64, %p65
      %p68 = scmp.ne.s32.totalorder %s51, %s67
      %p69 = scmp.eq.s32.totalorder %s22, 0
      %p70 = por %p68, %p69
      %s71 = ssub.s32 %s25, %s34
      %s72 = ssub.s32 %s24, %s38
      %s73 = sor.u32 %s71, %s72
      %p74 = scmp.eq.s32.totalorder %s73, 0
      %s76 = sadd.s32 %s75, 1
      %s77 = scalar_select %p74, %s75, %s76
      %p80 = pneg %p74
      %p81 = scmp.eq.s32.totalorder %s16, 1
      %p82 = por %p80, %p81
      %p83 = scmp.ne.s32.totalorder %s75, %s78
      %p84 = scmp.eq.s32.totalorder %s16, 0
      %p85 = por %p83, %p84
      %p86 = scmp.ne.s32.totalorder %s75, %s78
      %p87 = scmp.eq.s32.totalorder %s21, 1
      %p88 = por %p86, %p87
      %p89 = scmp.ne.s32.totalorder %s78, %s79
      %p90 = scmp.eq.s32.totalorder %s21, 0
      %p91 = por %p89, %p90
      %p92 = scmp.ne.s32.totalorder %s78, %s79
      %p93 = scmp.eq.s32.totalorder %s22, 1
      %p94 = por %p92, %p93
      %p96 = scmp.ne.s32.totalorder %s79, %s95
      %p97 = scmp.eq.s32.totalorder %s22, 0
      %p98 = por %p96, %p97
      %s99 = ssub.s32 %s24, %s38
      %p100 = scmp.eq.s32.totalorder %s99, 0
      %s102 = sadd.s32 %s101, 1
      %s103 = scalar_select %p100, %s101, %s102
      %p106 = pneg %p100
      %p107 = scmp.eq.s32.totalorder %s16, 1
      %p108 = por %p106, %p107
      %p109 = scmp.ne.s32.totalorder %s101, %s104
      %p110 = scmp.eq.s32.totalorder %s16, 0
      %p111 = por %p109, %p110
      %p112 = scmp.ne.s32.totalorder %s101, %s104
      %p113 = scmp.eq.s32.totalorder %s21, 1
      %p114 = por %p112, %p113
      %p115 = scmp.ne.s32.totalorder %s104, %s105
      %p116 = scmp.eq.s32.totalorder %s21, 0
      %p117 = por %p115, %p116
      %p118 = scmp.ne.s32.totalorder %s104, %s105
      %p119 = scmp.eq.s32.totalorder %s22, 1
      %p120 = por %p118, %p119
      %p122 = scmp.ne.s32.totalorder %s105, %s121
      %p123 = scmp.eq.s32.totalorder %s22, 0
      %p124 = por %p122, %p123
      %s125 = ssub.s32 %s23, %s42
      %s126 = ssub.s32 %s24, %s38
      %s127 = sor.u32 %s125, %s126
      %p128 = scmp.eq.s32.totalorder %s127, 0
      %s130 = sadd.s32 %s129, 1
      %s131 = scalar_select %p128, %s129, %s130
      %p134 = pneg %p128
      %p135 = scmp.eq.s32.totalorder %s16, 1
      %p136 = por %p134, %p135
      %p137 = scmp.ne.s32.totalorder %s129, %s132
      %p138 = scmp.eq.s32.totalorder %s16, 0
      %p139 = por %p137, %p138
      %p140 = scmp.ne.s32.totalorder %s129, %s132
      %p141 = scmp.eq.s32.totalorder %s21, 1
      %p142 = por %p140, %p141
      %p143 = scmp.ne.s32.totalorder %s132, %s133
      %p144 = scmp.eq.s32.totalorder %s21, 0
      %p145 = por %p143, %p144
      %p146 = scmp.ne.s32.totalorder %s132, %s133
      %p147 = scmp.eq.s32.totalorder %s22, 1
      %p148 = por %p146, %p147
      %p150 = scmp.ne.s32.totalorder %s133, %s149
      %p151 = scmp.eq.s32.totalorder %s22, 0
      %p152 = por %p150, %p151
      %p153 = scmp.le.s32.totalorder 1, %s16
      %p154 = scmp.lt.s32.totalorder %s16, 3
      %p155 = pnand %p153, %p154
      %p156 = pneg %p155
      // Predicated region
      $region9: #{tpu_custom_call.1} parent=5 // pred_check
        _
      $region10: #{tpu_custom_call.1} parent=5 // pred_check_branch
        %158 = sbr.rel (%p155) target = $region12
      $region11: #{tpu_custom_call.1} parent=5 // pred_region
        %s159 = ssub.s32 %s16, 1
        // Predicated region
        $region13: #{tpu_custom_call.1} parent=11 // pred_check
          %p160 = pneg %p91
        $region14: #{tpu_custom_call.1} parent=11 // pred_check_branch
          %162 = sbr.rel (%p160) target = $region16
        $region15: #{tpu_custom_call.1} parent=11 // pred_region
          %s163 = smul.u32 48, %s28
          %s165 = ssub.s32 3072, 3072
          %166 = vsyncadd [#allocation7], %s165
          %s167 = sadd.s32 %s27, %s163
          %s168 = smul.addr %s167, 64
          %s169 = scalar_lea.hbm %s1, %s168
          %s170 = sshll.u32 [#allocation6], 4
          %s171 = int_to_ptr.vmem [resolvable:$true] %s170
          %176 = dma.hbm_to_vmem [thread:$0]  %s169, 3072, %s171, [#allocation7], 64, 64, 4
        $region16: #{tpu_custom_call.1} parent=11 // pred_fallthru
          _
        // Predicated region
        $region17: #{tpu_custom_call.1} parent=11 // pred_check
          %p177 = pneg %p117
        $region18: #{tpu_custom_call.1} parent=11 // pred_check_branch
          %179 = sbr.rel (%p177) target = $region20
        $region19: #{tpu_custom_call.1} parent=11 // pred_region
          %p180 = scmp.lt.s32.totalorder %s27, 0
          %s181 = scalar_select %p180, %s27, 0
          %s182 = scalar_lea.vmem %s2, %s181
        $region20: #{tpu_custom_call.1} parent=11 // pred_fallthru
          _
      $region12: #{tpu_custom_call.1} parent=5 // pred_fallthru
        _
      %p183 = scmp.lt.s32.totalorder %s16, 2
      // Predicated region
      $region21: #{tpu_custom_call.1} parent=5 // pred_check
        %p184 = pneg %p183
      $region22: #{tpu_custom_call.1} parent=5 // pred_check_branch
        %186 = sbr.rel (%p184) target = $region24
      $region23: #{tpu_custom_call.1} parent=5 // pred_region
        // Predicated region
        $region25: #{tpu_custom_call.1} parent=23 // pred_check
          %p187 = pneg %p57
        $region26: #{tpu_custom_call.1} parent=23 // pred_check_branch
          %189 = sbr.rel (%p187) target = $region28
        $region27: #{tpu_custom_call.1} parent=23 // pred_region
          %s190 = sand.u32 %s47, 1
          %s191 = scalar_lea.sflag [#allocation4], %s190
          %s192 = sand.u32 %s47, 1
          %s193 = smul.addr %s192, 96
          %s194 = scalar_lea.vmem [#allocation3], %s193
          %s195 = smul.u32 8, %s23
          %s196 = smul.u32 3, %s25
          %s198 = ssub.s32 1536, 1536
          %199 = vsyncadd %s191, %s198
          %s200 = smul.addr %s195, 3
          %s201 = sadd.s32 %s196, %s200
          %s202 = smul.addr %s201, 64
          %s203 = scalar_lea.hbm %s0, %s202
          %s204 = sshll.u32 %s194, 4
          %s205 = int_to_ptr.vmem [resolvable:$true] %s204
          %210 = dma.hbm_to_vmem [thread:$0]  %s203, 1536, %s205, %s191, 192, 192, 12
        $region28: #{tpu_custom_call.1} parent=23 // pred_fallthru
          _
      $region24: #{tpu_custom_call.1} parent=5 // pred_fallthru
        _
      %p211 = scmp.le.s32.totalorder 1, %s16
      %p212 = scmp.lt.s32.totalorder %s16, 3
      %p213 = pnand %p211, %p212
      %p214 = pneg %p213
      // Predicated region
      $region29: #{tpu_custom_call.1} parent=5 // pred_check
        _
      $region30: #{tpu_custom_call.1} parent=5 // pred_check_branch
        %216 = sbr.rel (%p213) target = $region32
      $region31: #{tpu_custom_call.1} parent=5 // pred_region
        %s217 = ssub.s32 %s16, 1
        %s218 = sand.u32 %s50, 1
        %s219 = scalar_lea.sflag [#allocation4], %s218
        %s220 = sand.u32 %s50, 1
        %s221 = smul.addr %s220, 96
        %s222 = scalar_lea.vmem [#allocation3], %s221
        // Predicated region
        $region33: #{tpu_custom_call.1} parent=31 // pred_check
          %p223 = pneg %p63
        $region34: #{tpu_custom_call.1} parent=31 // pred_check_branch
          %225 = sbr.rel (%p223) target = $region36
        $region35: #{tpu_custom_call.1} parent=31 // pred_region
          %226 = dma.done %s219, 1536
        $region36: #{tpu_custom_call.1} parent=31 // pred_fallthru
          _
        // Predicated region
        $region37: #{tpu_custom_call.1} parent=31 // pred_check
          %p227 = pneg %p91
        $region38: #{tpu_custom_call.1} parent=31 // pred_check_branch
          %229 = sbr.rel (%p227) target = $region40
        $region39: #{tpu_custom_call.1} parent=31 // pred_region
          %230 = dma.done [#allocation7], 3072
        $region40: #{tpu_custom_call.1} parent=31 // pred_fallthru
          _
        %s231 = sand.u32 %s50, 1
        %s232 = scalar_lea.sflag [#allocation4], %s231
        %s233 = sand.u32 %s50, 1
        %s234 = smul.addr %s233, 96
        %s235 = scalar_lea.vmem [#allocation3], %s234
        %p236 = pneg %p63
        %p237 = pneg %p60
        %p238 = pneg %p91
        %p239 = pneg %p88
        %p240 = scmp.lt.s32.totalorder %s27, 0
        %s241 = scalar_select %p240, %s27, 0
        %s242 = scalar_lea.vmem %s2, %s241
        %p243 = pneg %p117
        %p244 = pneg %p114
        %p245 = pneg %p145
        %p246 = pneg %p142
        %s247 = sand.u32 %s132, 1
        %s248 = scalar_lea.sflag [#allocation5], %s247
        %s249 = sand.u32 %s132, 1
        %s250 = smul.addr %s249, 32
        %s251 = scalar_lea.vmem [#allocation8], %s250
        %s252 = smul.u32 8, %s26
        %s253 = smul.u32 3, %s28
        %s254 = smul.u32 48, %s28
        %p255 = scmp.lt.s32.totalorder %s27, 0
        %s256 = scalar_select %p255, %s27, 0
        %s257 = scalar_lea.vmem %s2, %s256
        %s258 = smul.u32 8, %s26
        %p260 = scmp.eq.s32.totalorder %s28, 0
        // Predicated region
        $region41: #{tpu_custom_call.1} parent=31 // pred_check
          %p261 = pneg %p260
        $region42: #{tpu_custom_call.1} parent=31 // pred_check_branch
          %263 = sbr.rel (%p261) target = $region44
        $region43: #{tpu_custom_call.1} parent=31 // pred_region
          %v264 = vld [vmem:[%s257] sm:$0x1]
          %v266 = vlaneseq
          %v267 = vshrl.u32 %v266, 7
          %v268 = vsub.s32 0, %v267
          %v269 = vrot.slane %v264, %v268
          %271 = vst [vmem:[#allocation2] sm:$0xff] %v269
          %272 = vst [vmem:[#allocation2 + $0x8] sm:$0xff] %v269
          %273 = vst [vmem:[#allocation2 + $0x10] sm:$0xff] %v269
          %274 = vst [vmem:[#allocation2 + $0x18] sm:$0xff] %v269
          %275 = vst [vmem:[#allocation2 + $0x20] sm:$0xff] %v269
          %276 = vst [vmem:[#allocation2 + $0x28] sm:$0xff] %v269
          %277 = vst [vmem:[#allocation2 + $0x30] sm:$0xff] %v269
          %278 = vst [vmem:[#allocation2 + $0x38] sm:$0xff] %v269
        $region44: #{tpu_custom_call.1} parent=31 // pred_fallthru
          _
        %v279 = vld [vmem:[#allocation2] sm:$0xff]
        %v280 = vld [vmem:[#allocation2 + $0x8] sm:$0xff]
        %v281 = vld [vmem:[#allocation2 + $0x10] sm:$0xff]
        %v282 = vld [vmem:[#allocation2 + $0x18] sm:$0xff]
        %v283 = vld [vmem:[#allocation2 + $0x20] sm:$0xff]
        %v284 = vld [vmem:[#allocation2 + $0x28] sm:$0xff]
        %v285 = vld [vmem:[#allocation2 + $0x30] sm:$0xff]
        %v286 = vld [vmem:[#allocation2 + $0x38] sm:$0xff]
        %v287 = vld [vmem:[%s222] sm:$0xff]
        %v288 = vld [vmem:[%s222 + $0x8] sm:$0xf]
        %v289 = vld [vmem:[%s222 + $0xc] sm:$0xff]
        %v290 = vld [vmem:[%s222 + $0x14] sm:$0xf]
        %v291 = vld [vmem:[%s222 + $0x18] sm:$0xff]
        %v292 = vld [vmem:[%s222 + $0x20] sm:$0xf]
        %v293 = vld [vmem:[%s222 + $0x24] sm:$0xff]
        %v294 = vld [vmem:[%s222 + $0x2c] sm:$0xf]
        %v295 = vld [vmem:[%s222 + $0x30] sm:$0xff]
        %v296 = vld [vmem:[%s222 + $0x38] sm:$0xf]
        %v297 = vld [vmem:[%s222 + $0x3c] sm:$0xff]
        %v298 = vld [vmem:[%s222 + $0x44] sm:$0xf]
        %v299 = vld [vmem:[%s222 + $0x48] sm:$0xff]
        %v300 = vld [vmem:[%s222 + $0x50] sm:$0xf]
        %v301 = vld [vmem:[%s222 + $0x54] sm:$0xff]
        %v302 = vld [vmem:[%s222 + $0x5c] sm:$0xf]
        %v303 = vld [vmem:[#allocation6] sm:$0xf]
        %v304 = vld [vmem:[#allocation6 + $0x4] sm:$0xf]
        %v305 = vld [vmem:[#allocation6 + $0x8] sm:$0xf]
        %v306 = vld [vmem:[#allocation6 + $0xc] sm:$0xf]
        %v307 = vld [vmem:[#allocation6 + $0x10] sm:$0xf]
        %v308 = vld [vmem:[#allocation6 + $0x14] sm:$0xf]
        %v309 = vld [vmem:[#allocation6 + $0x18] sm:$0xf]
        %v310 = vld [vmem:[#allocation6 + $0x1c] sm:$0xf]
        %v311 = vld [vmem:[#allocation6 + $0x20] sm:$0xf]
        %v312 = vld [vmem:[#allocation6 + $0x24] sm:$0xf]
        %v313 = vld [vmem:[#allocation6 + $0x28] sm:$0xf]
        %v314 = vld [vmem:[#allocation6 + $0x2c] sm:$0xf]
        %v315 = vld [vmem:[#allocation6 + $0x30] sm:$0xf]
        %v316 = vld [vmem:[#allocation6 + $0x34] sm:$0xf]
        %v317 = vld [vmem:[#allocation6 + $0x38] sm:$0xf]
        %v318 = vld [vmem:[#allocation6 + $0x3c] sm:$0xf]
        %v319 = vld [vmem:[#allocation6 + $0x40] sm:$0xf]
        %v320 = vld [vmem:[#allocation6 + $0x44] sm:$0xf]
        %v321 = vld [vmem:[#allocation6 + $0x48] sm:$0xf]
        %v322 = vld [vmem:[#allocation6 + $0x4c] sm:$0xf]
        %v323 = vld [vmem:[#allocation6 + $0x50] sm:$0xf]
        %v324 = vld [vmem:[#allocation6 + $0x54] sm:$0xf]
        %v325 = vld [vmem:[#allocation6 + $0x58] sm:$0xf]
        %v326 = vld [vmem:[#allocation6 + $0x5c] sm:$0xf]
        %v327 = vld [vmem:[#allocation6 + $0x60] sm:$0xf]
        %v328 = vld [vmem:[#allocation6 + $0x64] sm:$0xf]
        %v329 = vld [vmem:[#allocation6 + $0x68] sm:$0xf]
        %v330 = vld [vmem:[#allocation6 + $0x6c] sm:$0xf]
        %v331 = vld [vmem:[#allocation6 + $0x70] sm:$0xf]
        %v332 = vld [vmem:[#allocation6 + $0x74] sm:$0xf]
        %v333 = vld [vmem:[#allocation6 + $0x78] sm:$0xf]
        %v334 = vld [vmem:[#allocation6 + $0x7c] sm:$0xf]
        %v335 = vld [vmem:[#allocation6 + $0x80] sm:$0xf]
        %v336 = vld [vmem:[#allocation6 + $0x84] sm:$0xf]
        %v337 = vld [vmem:[#allocation6 + $0x88] sm:$0xf]
        %v338 = vld [vmem:[#allocation6 + $0x8c] sm:$0xf]
        %v339 = vld [vmem:[#allocation6 + $0x90] sm:$0xf]
        %v340 = vld [vmem:[#allocation6 + $0x94] sm:$0xf]
        %v341 = vld [vmem:[#allocation6 + $0x98] sm:$0xf]
        %v342 = vld [vmem:[#allocation6 + $0x9c] sm:$0xf]
        %v343 = vld [vmem:[#allocation6 + $0xa0] sm:$0xf]
        %v344 = vld [vmem:[#allocation6 + $0xa4] sm:$0xf]
        %v345 = vld [vmem:[#allocation6 + $0xa8] sm:$0xf]
        %v346 = vld [vmem:[#allocation6 + $0xac] sm:$0xf]
        %v347 = vld [vmem:[#allocation6 + $0xb0] sm:$0xf]
        %v348 = vld [vmem:[#allocation6 + $0xb4] sm:$0xf]
        %v349 = vld [vmem:[#allocation6 + $0xb8] sm:$0xf]
        %v350 = vld [vmem:[#allocation6 + $0xbc] sm:$0xf]
        %v367 = vunpack.c.l.b16 %v287
        %v368 = vunpack.c.h.b16 %v287
        %v369 = vunpack.c.l.b16 %v288
        %v370 = vunpack.c.l.b16 %v289
        %v371 = vunpack.c.h.b16 %v289
        %v372 = vunpack.c.l.b16 %v290
        %v373 = vunpack.c.l.b16 %v291
        %v374 = vunpack.c.h.b16 %v291
        %v375 = vunpack.c.l.b16 %v292
        %v376 = vunpack.c.l.b16 %v293
        %v377 = vunpack.c.h.b16 %v293
        %v378 = vunpack.c.l.b16 %v294
        %v379 = vunpack.c.l.b16 %v295
        %v380 = vunpack.c.h.b16 %v295
        %v381 = vunpack.c.l.b16 %v296
        %v382 = vunpack.c.l.b16 %v297
        %v383 = vunpack.c.h.b16 %v297
        %v384 = vunpack.c.l.b16 %v298
        %v385 = vunpack.c.l.b16 %v299
        %v386 = vunpack.c.h.b16 %v299
        %v387 = vunpack.c.l.b16 %v300
        %v388 = vunpack.c.l.b16 %v301
        %v389 = vunpack.c.h.b16 %v301
        %v390 = vunpack.c.l.b16 %v302
        %v391 = vpack.c.b16 %v370, %v367
        %v392 = vpack.c.b16 %v371, %v368
        %v393 = vpack.c.b16 %v372, %v369
        %v394 = vpack.c.b16 %v376, %v373
        %v395 = vpack.c.b16 %v377, %v374
        %v396 = vpack.c.b16 %v378, %v375
        %v397 = vpack.c.b16 %v382, %v379
        %v398 = vpack.c.b16 %v383, %v380
        %v399 = vpack.c.b16 %v384, %v381
        %v400 = vpack.c.b16 %v388, %v385
        %v401 = vpack.c.b16 %v389, %v386
        %v402 = vpack.c.b16 %v390, %v387
        %v463 = vunpack.c.l.b16 %v303
        %v464 = vunpack.c.l.b16 %v304
        %v465 = vunpack.c.l.b16 %v305
        %v466 = vunpack.c.l.b16 %v306
        %v467 = vunpack.c.l.b16 %v307
        %v468 = vunpack.c.l.b16 %v308
        %v469 = vunpack.c.l.b16 %v309
        %v470 = vunpack.c.l.b16 %v310
        %v471 = vunpack.c.l.b16 %v311
        %v472 = vunpack.c.l.b16 %v312
        %v473 = vunpack.c.l.b16 %v313
        %v474 = vunpack.c.l.b16 %v314
        %v475 = vunpack.c.l.b16 %v315
        %v476 = vunpack.c.l.b16 %v316
        %v477 = vunpack.c.l.b16 %v317
        %v478 = vunpack.c.l.b16 %v318
        %v479 = vunpack.c.l.b16 %v319
        %v480 = vunpack.c.l.b16 %v320
        %v481 = vunpack.c.l.b16 %v321
        %v482 = vunpack.c.l.b16 %v322
        %v483 = vunpack.c.l.b16 %v323
        %v484 = vunpack.c.l.b16 %v324
        %v485 = vunpack.c.l.b16 %v325
        %v486 = vunpack.c.l.b16 %v326
        %v487 = vunpack.c.l.b16 %v327
        %v488 = vunpack.c.l.b16 %v328
        %v489 = vunpack.c.l.b16 %v329
        %v490 = vunpack.c.l.b16 %v330
        %v491 = vunpack.c.l.b16 %v331
        %v492 = vunpack.c.l.b16 %v332
        %v493 = vunpack.c.l.b16 %v333
        %v494 = vunpack.c.l.b16 %v334
        %v495 = vunpack.c.l.b16 %v335
        %v496 = vunpack.c.l.b16 %v336
        %v497 = vunpack.c.l.b16 %v337
        %v498 = vunpack.c.l.b16 %v338
        %v499 = vunpack.c.l.b16 %v339
        %v500 = vunpack.c.l.b16 %v340
        %v501 = vunpack.c.l.b16 %v341
        %v502 = vunpack.c.l.b16 %v342
        %v503 = vunpack.c.l.b16 %v343
        %v504 = vunpack.c.l.b16 %v344
        %v505 = vunpack.c.l.b16 %v345
        %v506 = vunpack.c.l.b16 %v346
        %v507 = vunpack.c.l.b16 %v347
        %v508 = vunpack.c.l.b16 %v348
        %v509 = vunpack.c.l.b16 %v349
        %v510 = vunpack.c.l.b16 %v350
        %v511 = vpack.c.b16 %v464, %v463
        %v512 = vpack.c.b16 %v466, %v465
        %v513 = vpack.c.b16 %v468, %v467
        %v514 = vpack.c.b16 %v470, %v469
        %v515 = vpack.c.b16 %v472, %v471
        %v516 = vpack.c.b16 %v474, %v473
        %v517 = vpack.c.b16 %v476, %v475
        %v518 = vpack.c.b16 %v478, %v477
        %v519 = vpack.c.b16 %v480, %v479
        %v520 = vpack.c.b16 %v482, %v481
        %v521 = vpack.c.b16 %v484, %v483
        %v522 = vpack.c.b16 %v486, %v485
        %v523 = vpack.c.b16 %v488, %v487
        %v524 = vpack.c.b16 %v490, %v489
        %v525 = vpack.c.b16 %v492, %v491
        %v526 = vpack.c.b16 %v494, %v493
        %v527 = vpack.c.b16 %v496, %v495
        %v528 = vpack.c.b16 %v498, %v497
        %v529 = vpack.c.b16 %v500, %v499
        %v530 = vpack.c.b16 %v502, %v501
        %v531 = vpack.c.b16 %v504, %v503
        %v532 = vpack.c.b16 %v506, %v505
        %v533 = vpack.c.b16 %v508, %v507
        %v534 = vpack.c.b16 %v510, %v509
        %559 = vmatprep.subr.bf16.mxu0 0
        %560 = vmatpush1.bf16.msra.mxu0 %v518
        %561 = vmatprep.subr.bf16.mxu0 0
        %562 = vmatpush1.bf16.msra.mxu0 %v517
        %563 = vmatprep.subr.bf16.mxu0 0
        %564 = vmatpush1.bf16.msra.mxu0 %v516
        %565 = vmatprep.subr.bf16.mxu0 0
        %566 = vmatpush1.bf16.msra.mxu0 %v515
        %567 = vmatprep.subr.bf16.mxu0 0
        %568 = vmatpush1.bf16.msra.mxu0 %v514
        %569 = vmatprep.subr.bf16.mxu0 0
        %570 = vmatpush1.bf16.msra.mxu0 %v513
        %571 = vmatprep.subr.bf16.mxu0 0
        %572 = vmatpush1.bf16.msra.mxu0 %v512
        %573 = vmatprep.subr.bf16.mxu0 0
        %574 = vmatpush1.bf16.msra.mxu0 %v511
        %575 = vmatprep.subr.bf16.mxu0 0
        %576 = vmatpush2.bf16.msra.mxu0 %v526
        %577 = vmatprep.subr.bf16.mxu0 0
        %578 = vmatpush2.bf16.msra.mxu0 %v525
        %579 = vmatprep.subr.bf16.mxu0 0
        %580 = vmatpush2.bf16.msra.mxu0 %v524
        %581 = vmatprep.subr.bf16.mxu0 0
        %582 = vmatpush2.bf16.msra.mxu0 %v523
        %583 = vmatprep.subr.bf16.mxu0 0
        %584 = vmatpush2.bf16.msra.mxu0 %v522
        %585 = vmatprep.subr.bf16.mxu0 0
        %586 = vmatpush2.bf16.msra.mxu0 %v521
        %587 = vmatprep.subr.bf16.mxu0 0
        %588 = vmatpush2.bf16.msra.mxu0 %v520
        %589 = vmatprep.subr.bf16.mxu0 0
        %590 = vmatpush2.bf16.msra.mxu0 %v519
        %591 = vmatprep.mubr.bf16.mxu0 %v392
        %592 = vmatmul.mubr.bf16.gmra.mxu0 %v391
        %v593 = vpop.f32.mrf.mxu0
        %v594 = vadd.f32 0.0, %v593
        %v595 = vpop.f32.mrf.mxu0
        %v596 = vpop.f32.mrf.mxu0
        %v597 = vadd.f32 0.0, %v596
        %v598 = vpop.f32.mrf.mxu0
        %599 = vmatprep.mubr.bf16.mxu0 %v395
        %600 = vmatmul.mubr.bf16.gmra.mxu0 %v394
        %v601 = vpop.f32.mrf.mxu0
        %v602 = vadd.f32 0.0, %v601
        %v603 = vpop.f32.mrf.mxu0
        %v604 = vpop.f32.mrf.mxu0
        %v605 = vadd.f32 0.0, %v604
        %v606 = vpop.f32.mrf.mxu0
        %607 = vmatprep.mubr.bf16.mxu0 %v398
        %608 = vmatmul.mubr.bf16.gmra.mxu0 %v397
        %v609 = vpop.f32.mrf.mxu0
        %v610 = vadd.f32 0.0, %v609
        %v611 = vpop.f32.mrf.mxu0
        %v612 = vpop.f32.mrf.mxu0
        %v613 = vadd.f32 0.0, %v612
        %v614 = vpop.f32.mrf.mxu0
        %615 = vmatprep.mubr.bf16.mxu0 %v401
        %616 = vmatmul.mubr.bf16.gmra.mxu0 %v400
        %v617 = vpop.f32.mrf.mxu0
        %v618 = vadd.f32 0.0, %v617
        %v619 = vpop.f32.mrf.mxu0
        %v620 = vpop.f32.mrf.mxu0
        %v621 = vadd.f32 0.0, %v620
        %v622 = vpop.f32.mrf.mxu0
        %623 = vdwg.mxu0
        %624 = vmatprep.subr.bf16.mxu0 0
        %625 = vmatpush1.bf16.msra.mxu0 %v534
        %626 = vmatprep.subr.bf16.mxu0 0
        %627 = vmatpush1.bf16.msra.mxu0 %v533
        %628 = vmatprep.subr.bf16.mxu0 0
        %629 = vmatpush1.bf16.msra.mxu0 %v532
        %630 = vmatprep.subr.bf16.mxu0 0
        %631 = vmatpush1.bf16.msra.mxu0 %v531
        %632 = vmatprep.subr.bf16.mxu0 0
        %633 = vmatpush1.bf16.msra.mxu0 %v530
        %634 = vmatprep.subr.bf16.mxu0 0
        %635 = vmatpush1.bf16.msra.mxu0 %v529
        %636 = vmatprep.subr.bf16.mxu0 0
        %637 = vmatpush1.bf16.msra.mxu0 %v528
        %638 = vmatprep.subr.bf16.mxu0 0
        %639 = vmatpush1.bf16.msra.mxu0 %v527
        %640 = vmatprep.subr.bf16.mxu0 0
        %641 = vmatpush2.bf16.msra.mxu0 0
        %642 = vmatprep.subr.bf16.mxu0 0
        %643 = vmatpush2.bf16.msra.mxu0 0
        %644 = vmatprep.subr.bf16.mxu0 0
        %645 = vmatpush2.bf16.msra.mxu0 0
        %646 = vmatprep.subr.bf16.mxu0 0
        %647 = vmatpush2.bf16.msra.mxu0 0
        %648 = vmatprep.subr.bf16.mxu0 0
        %649 = vmatpush2.bf16.msra.mxu0 0
        %650 = vmatprep.subr.bf16.mxu0 0
        %651 = vmatpush2.bf16.msra.mxu0 0
        %652 = vmatprep.subr.bf16.mxu0 0
        %653 = vmatpush2.bf16.msra.mxu0 0
        %654 = vmatprep.subr.bf16.mxu0 0
        %655 = vmatpush2.bf16.msra.mxu0 0
        %656 = vmatprep.mubr.bf16.mxu0 0
        %657 = vmatmul.mubr.bf16.gmra.mxu0 %v393
        %v658 = vpop.f32.mrf.mxu0
        %v659 = vadd.f32 %v594, %v658
        %v660 = vpop.f32.mrf.mxu0
        %v661 = vpop.f32.mrf.mxu0
        %v662 = vadd.f32 %v597, %v661
        %v663 = vpop.f32.mrf.mxu0
        %664 = vmatprep.mubr.bf16.mxu0 0
        %665 = vmatmul.mubr.bf16.gmra.mxu0 %v396
        %v666 = vpop.f32.mrf.mxu0
        %v667 = vadd.f32 %v602, %v666
        %v668 = vpop.f32.mrf.mxu0
        %v669 = vpop.f32.mrf.mxu0
        %v670 = vadd.f32 %v605, %v669
        %v671 = vpop.f32.mrf.mxu0
        %672 = vmatprep.mubr.bf16.mxu0 0
        %673 = vmatmul.mubr.bf16.gmra.mxu0 %v399
        %v674 = vpop.f32.mrf.mxu0
        %v675 = vadd.f32 %v610, %v674
        %v676 = vpop.f32.mrf.mxu0
        %v677 = vpop.f32.mrf.mxu0
        %v678 = vadd.f32 %v613, %v677
        %v679 = vpop.f32.mrf.mxu0
        %680 = vmatprep.mubr.bf16.mxu0 0
        %681 = vmatmul.mubr.bf16.gmra.mxu0 %v402
        %v682 = vpop.f32.mrf.mxu0
        %v683 = vadd.f32 %v618, %v682
        %v684 = vpop.f32.mrf.mxu0
        %v685 = vpop.f32.mrf.mxu0
        %v686 = vadd.f32 %v621, %v685
        %v687 = vpop.f32.mrf.mxu0
        %688 = vdwg.mxu0
        %v689 = vadd.f32 %v279, %v659
        %v690 = vadd.f32 %v280, %v662
        %v691 = vadd.f32 %v281, %v667
        %v692 = vadd.f32 %v282, %v670
        %v693 = vadd.f32 %v283, %v675
        %v694 = vadd.f32 %v284, %v678
        %v695 = vadd.f32 %v285, %v683
        %v696 = vadd.f32 %v286, %v686
        %697 = vst [vmem:[#allocation2] sm:$0xff] %v689
        %698 = vst [vmem:[#allocation2 + $0x8] sm:$0xff] %v690
        %699 = vst [vmem:[#allocation2 + $0x10] sm:$0xff] %v691
        %700 = vst [vmem:[#allocation2 + $0x18] sm:$0xff] %v692
        %701 = vst [vmem:[#allocation2 + $0x20] sm:$0xff] %v693
        %702 = vst [vmem:[#allocation2 + $0x28] sm:$0xff] %v694
        %703 = vst [vmem:[#allocation2 + $0x30] sm:$0xff] %v695
        %704 = vst [vmem:[#allocation2 + $0x38] sm:$0xff] %v696
        // Predicated region
        $region45: #{tpu_custom_call.1} parent=31 // pred_check
          %p705 = pneg %p260
        $region46: #{tpu_custom_call.1} parent=31 // pred_check_branch
          %707 = sbr.rel (%p705) target = $region48
        $region47: #{tpu_custom_call.1} parent=31 // pred_region
          %v708 = vld [vmem:[#allocation2] sm:$0xff]
          %v709 = vld [vmem:[#allocation2 + $0x8] sm:$0xff]
          %v710 = vld [vmem:[#allocation2 + $0x10] sm:$0xff]
          %v711 = vld [vmem:[#allocation2 + $0x18] sm:$0xff]
          %v712 = vld [vmem:[#allocation2 + $0x20] sm:$0xff]
          %v713 = vld [vmem:[#allocation2 + $0x28] sm:$0xff]
          %v714 = vld [vmem:[#allocation2 + $0x30] sm:$0xff]
          %v715 = vld [vmem:[#allocation2 + $0x38] sm:$0xff]
          %v716 = vmax.f32 %v708, 0.0
          %v717 = vmax.f32 %v709, 0.0
          %v718 = vmax.f32 %v710, 0.0
          %v719 = vmax.f32 %v711, 0.0
          %v720 = vmax.f32 %v712, 0.0
          %v721 = vmax.f32 %v713, 0.0
          %v722 = vmax.f32 %v714, 0.0
          %v723 = vmax.f32 %v715, 0.0
          %v724 = vpack.c.bf16 %v717, %v716
          %v725 = vpack.c.bf16 %v719, %v718
          %v726 = vpack.c.bf16 %v721, %v720
          %v727 = vpack.c.bf16 %v723, %v722
          %v732 = vunpack.c.l.b16 %v724
          %v733 = vunpack.c.h.b16 %v724
          %v734 = vunpack.c.l.b16 %v725
          %v735 = vunpack.c.h.b16 %v725
          %v736 = vunpack.c.l.b16 %v726
          %v737 = vunpack.c.h.b16 %v726
          %v738 = vunpack.c.l.b16 %v727
          %v739 = vunpack.c.h.b16 %v727
          %v740 = vpack.c.b16 %v732, %v732
          %v741 = vpack.c.b16 %v733, %v733
          %v742 = vpack.c.b16 %v734, %v734
          %v743 = vpack.c.b16 %v735, %v735
          %v744 = vpack.c.b16 %v736, %v736
          %v745 = vpack.c.b16 %v737, %v737
          %v746 = vpack.c.b16 %v738, %v738
          %v747 = vpack.c.b16 %v739, %v739
          %756 = vst [vmem:[%s251] sm:$0xf] %v740
          %757 = vst [vmem:[%s251 + $0x4] sm:$0xf] %v741
          %758 = vst [vmem:[%s251 + $0x8] sm:$0xf] %v742
          %759 = vst [vmem:[%s251 + $0xc] sm:$0xf] %v743
          %760 = vst [vmem:[%s251 + $0x10] sm:$0xf] %v744
          %761 = vst [vmem:[%s251 + $0x14] sm:$0xf] %v745
          %762 = vst [vmem:[%s251 + $0x18] sm:$0xf] %v746
          %763 = vst [vmem:[%s251 + $0x1c] sm:$0xf] %v747
        $region48: #{tpu_custom_call.1} parent=31 // pred_fallthru
          _
        %s764 = sand.u32 %s132, 1
        %s765 = scalar_lea.sflag [#allocation5], %s764
        %s766 = sand.u32 %s132, 1
        %s767 = smul.addr %s766, 32
        %s768 = scalar_lea.vmem [#allocation8], %s767
        // Predicated region
        $region49: #{tpu_custom_call.1} parent=31 // pred_check
          %p769 = pneg %p142
        $region50: #{tpu_custom_call.1} parent=31 // pred_check_branch
          %771 = sbr.rel (%p769) target = $region52
        $region51: #{tpu_custom_call.1} parent=31 // pred_region
          %s772 = smul.u32 8, %s26
          %s774 = ssub.s32 512, 512
          %775 = vsyncadd %s765, %s774
          %s776 = sadd.s32 %s27, %s772
          %s777 = smul.addr %s776, 64
          %s778 = scalar_lea.hbm %s3, %s777
          %s779 = sshll.u32 %s768, 4
          %s780 = int_to_ptr.vmem [resolvable:$true] %s779
          %785 = dma.vmem_to_hbm [thread:$0]  %s780, 512, %s778, %s765, 64, 64, 4
        $region52: #{tpu_custom_call.1} parent=31 // pred_fallthru
          _
      $region32: #{tpu_custom_call.1} parent=5 // pred_fallthru
        _
      %p786 = scmp.le.s32.totalorder 2, %s16
      // Predicated region
      $region53: #{tpu_custom_call.1} parent=5 // pred_check
        %p787 = pneg %p786
      $region54: #{tpu_custom_call.1} parent=5 // pred_check_branch
        %789 = sbr.rel (%p787) target = $region56
      $region55: #{tpu_custom_call.1} parent=5 // pred_region
        %s790 = ssub.s32 %s16, 2
        // Predicated region
        $region57: #{tpu_custom_call.1} parent=55 // pred_check
          %p791 = pneg %p148
        $region58: #{tpu_custom_call.1} parent=55 // pred_check_branch
          %793 = sbr.rel (%p791) target = $region60
        $region59: #{tpu_custom_call.1} parent=55 // pred_region
          %s794 = sand.u32 %s133, 1
          %s795 = scalar_lea.sflag [#allocation5], %s794
          %s796 = sand.u32 %s133, 1
          %s797 = smul.addr %s796, 32
          %s798 = scalar_lea.vmem [#allocation8], %s797
          %799 = dma.done %s795, 512
        $region60: #{tpu_custom_call.1} parent=55 // pred_fallthru
          _
      $region56: #{tpu_custom_call.1} parent=5 // pred_fallthru
        _
    $region6: #{tpu_custom_call.1} parent=1 // loop_footer
      %s20 = sadd.s32 1, %s16
    $region7: #{tpu_custom_call.1} parent=1 // loop_footer_branch
      %15 = sbr.rel target = $region3
    $region8: #{tpu_custom_call.1} parent=1 // loop_exit
      _
    %800 = vsyncpa [#allocation4], 1
    %s801 = scalar_lea.sflag [#allocation4], 1
    %802 = vsyncpa %s801, 1
    %803 = vsyncpa [#allocation7], 1
    %804 = vsyncpa [#allocation5], 1
    %s805 = scalar_lea.sflag [#allocation5], 1
    %806 = vsyncpa %s805, 1

</llo_original>
